<compile_context>
chip_gen: v7x
topology: tpu7x:2x2x1
jax: 0.10.0
libtpu: 0.0.40
codegen_flags: <defaults>
</compile_context>

<pallas_src>
import functools

import jax
import jax.numpy as jnp
from jax import lax
from jax.experimental import pallas as pl
from jax.experimental.pallas import tpu as pltpu

LANE = 128
SUBLANE = 8
MAX_BLOCK_ROWS = 2048      # 2048 x 128 f32 = 1 MiB per streamed block
NCORES = 2                 # v7x has 2 TensorCores; serializes harmlessly on v5e/v6e


def _vmem_capacity_bytes():
    try:
        cap = int(pltpu.get_tpu_info().vmem_capacity_bytes)
        return max(32 << 20, min(cap, 128 << 20))
    except Exception:
        return 64 << 20    # conservative fallback (v7x per-TC physical VMEM)


def _flat_mask(shape, row0, n_valid):
    """valid[r, l] == (global_row*128 + lane) < n_valid."""
    rid = lax.broadcasted_iota(jnp.int32, shape, 0) + row0
    lane = lax.broadcasted_iota(jnp.int32, shape, 1)
    return rid * LANE + lane < n_valid


# ---------------------------------------------------------------------------
# Single-pass path: whole tensor resident in VMEM (1R + 1W HBM traffic).
# ---------------------------------------------------------------------------
def _single_pass_kernel(x_ref, o_ref, *, n_valid, masked):
    x = x_ref[...].astype(jnp.float32)
    if masked:
        valid = _flat_mask(x.shape, 0, n_valid)
        lower = jnp.min(jnp.where(valid, x, jnp.inf))
        upper = jnp.max(jnp.where(valid, x, -jnp.inf))
    else:
        lower = jnp.min(x)
        upper = jnp.max(x)
    # clamp(x, global_min, global_max) is exactly a no-op at quantile == 1.
    scale = jnp.maximum(jnp.abs(lower), jnp.abs(upper))
    o_ref[...] = (x * (1.0 / scale)).astype(o_ref.dtype)


# ---------------------------------------------------------------------------
# Streaming path, pass (a): per-core partial (8, 128) min / max.
# ---------------------------------------------------------------------------
def _partial_minmax_kernel(x_ref, min_ref, max_ref, *, block_rows,
                           blocks_per_core, n_blocks, n_valid, masked):
    c = pl.program_id(0)
    s = pl.program_id(1)

    @pl.when(s == 0)
    def _init():
        min_ref[...] = jnp.full_like(min_ref, jnp.inf)
        max_ref[...] = jnp.full_like(max_ref, -jnp.inf)

    # TODO(synk): keep the fold in native bf16 on v6e/v7x to halve vreg traffic;
    # f32 accumulation kept here for simplicity (min/max are exact either way).
    x = x_ref[...].astype(jnp.float32)
    if masked:
        blk = jnp.minimum(c * blocks_per_core + s, n_blocks - 1)
        valid = _flat_mask(x.shape, blk * block_rows, n_valid)
        x_min = jnp.where(valid, x, jnp.inf)
        x_max = jnp.where(valid, x, -jnp.inf)
    else:
        x_min = x
        x_max = x
    # Fold the (block_rows, 128) tile to a single (8, 128) vreg in-register.
    # The reshape is (8,128)-tile aligned, so it is a view (no VMEM copy) and
    # the reduce over the leading axis is pure VPU elementwise min/max.
    x_min = x_min.reshape(block_rows // SUBLANE, SUBLANE, LANE).min(axis=0)
    x_max = x_max.reshape(block_rows // SUBLANE, SUBLANE, LANE).max(axis=0)
    min_ref[...] = jnp.minimum(min_ref[...], x_min)
    max_ref[...] = jnp.maximum(max_ref[...], x_max)


# ---------------------------------------------------------------------------
# Streaming path, pass (b): out = x * (1/scale); 1/scale is an SMEM scalar.
# ---------------------------------------------------------------------------
def _scale_kernel(inv_ref, x_ref, o_ref):
    o_ref[...] = (x_ref[...].astype(jnp.float32) * inv_ref[0]).astype(o_ref.dtype)


# quantile < 1 path: clamp to [lower, upper] and multiply by 1/scale.
def _clamp_scale_kernel(b_ref, x_ref, o_ref):
    x = x_ref[...].astype(jnp.float32)
    o_ref[...] = (jnp.clip(x, b_ref[0], b_ref[1]) * b_ref[2]).astype(o_ref.dtype)


def _to_lane_major_2d(raw):
    """Flatten to (rows, 128).  Pad (values ignored via in-kernel masking) only
    when numel is not already a multiple of the dtype's packed sublane tile."""
    flat = raw.reshape(-1)
    n = flat.shape[0]
    itemsize = jnp.dtype(raw.dtype).itemsize
    pack_rows = SUBLANE * max(1, 4 // itemsize)      # 8 f32 / 16 bf16 / 32 int8
    pad = (-n) % (pack_rows * LANE)
    if pad:
        flat = jnp.pad(flat, (0, pad))
    return flat.reshape(-1, LANE), n


def raw_scale(raw, quantile=1.0, *, _force_streaming=False):
    assert 0.0 < quantile <= 1.0, "quantile must be within (0, 1]"
    assert raw.size > 0
    orig_shape = raw.shape
    orig_dtype = raw.dtype

    x2d, n = _to_lane_major_2d(raw)
    rows = x2d.shape[0]
    itemsize = jnp.dtype(orig_dtype).itemsize
    budget = int(_vmem_capacity_bytes() * 0.7)

    if quantile == 1.0:
        # q=0 / q=1 quantiles are exactly min / max: fully Pallas path.
        io_bytes = rows * LANE * itemsize
        f32_bytes = rows * LANE * 4
        need = 4 * io_bytes + 3 * f32_bytes            # generous in/out + temporaries

        if need <= budget and not _force_streaming:
            # ---- single pass: whole tensor resident in VMEM (1R + 1W) ----
            kernel = functools.partial(
                _single_pass_kernel, n_valid=n, masked=(rows * LANE != n))
            out2d = pl.pallas_call(
                kernel,
                out_shape=jax.ShapeDtypeStruct((rows, LANE), orig_dtype),
                in_specs=[pl.BlockSpec(memory_space=pltpu.MemorySpace.VMEM)],
                out_specs=pl.BlockSpec(memory_space=pltpu.MemorySpace.VMEM),
                compiler_params=pltpu.CompilerParams(
                    vmem_limit_bytes=min(budget, max(need + (4 << 20), 32 << 20))),
            )(x2d)
        else:
            # ---- streaming: parallel partial-reduce + parallel scale ----
            block_rows = min(MAX_BLOCK_ROWS, rows)
            n_blocks = pl.cdiv(rows, block_rows)
            bpc = pl.cdiv(n_blocks, NCORES)
            masked = (rows * LANE != n) or (rows % block_rows != 0)
            block_f32 = block_rows * LANE * 4
            limit = min(budget, max(32 << 20, 16 * block_f32))

            def x_map(c, s):
                # Clamp so a short last core re-reduces an already-seen block
                # (idempotent for min/max) instead of indexing out of bounds.
                return (jnp.minimum(c * bpc + s, n_blocks - 1), 0)

            reduce_kernel = functools.partial(
                _partial_minmax_kernel, block_rows=block_rows,
                blocks_per_core=bpc, n_blocks=n_blocks, n_valid=n, masked=masked)

            part_min, part_max = pl.pallas_call(
                reduce_kernel,
                out_shape=(jax.ShapeDtypeStruct((NCORES, SUBLANE, LANE), jnp.float32),
                           jax.ShapeDtypeStruct((NCORES, SUBLANE, LANE), jnp.float32)),
                grid=(NCORES, bpc),
                in_specs=[pl.BlockSpec((block_rows, LANE), x_map)],
                out_specs=(pl.BlockSpec((None, SUBLANE, LANE), lambda c, s: (c, 0, 0)),
                           pl.BlockSpec((None, SUBLANE, LANE), lambda c, s: (c, 0, 0))),
                compiler_params=pltpu.CompilerParams(
                    dimension_semantics=("parallel", "arbitrary"),
                    vmem_limit_bytes=limit),
            )(x2d)

            lower = jnp.min(part_min)                   # tiny (2,8,128) combines
            upper = jnp.max(part_max)
            scale = jnp.maximum(jnp.abs(lower), jnp.abs(upper))
            inv = (1.0 / scale).reshape(1).astype(jnp.float32)

            out2d = pl.pallas_call(
                _scale_kernel,
                out_shape=jax.ShapeDtypeStruct((rows, LANE), orig_dtype),
                grid=(n_blocks,),
                in_specs=[pl.BlockSpec(memory_space=pltpu.MemorySpace.SMEM),
                          pl.BlockSpec((block_rows, LANE), lambda i: (i, 0))],
                out_specs=pl.BlockSpec((block_rows, LANE), lambda i: (i, 0)),
                compiler_params=pltpu.CompilerParams(
                    dimension_semantics=("parallel",),
                    vmem_limit_bytes=limit),
            )(inv, x2d)
    else:
        # TODO(synk): interior quantiles need a full global sort; no clean Pallas
        # equivalent, so both bounds come from ONE jnp.quantile call (single sort).
        q = jnp.array([0.5 - quantile / 2.0, 0.5 + quantile / 2.0], jnp.float32)
        lu = jnp.quantile(raw.reshape(-1).astype(jnp.float32), q)
        scale = jnp.maximum(jnp.abs(lu[0]), jnp.abs(lu[1]))
        bounds = jnp.concatenate([lu, (1.0 / scale).reshape(1)]).astype(jnp.float32)

        block_rows = min(MAX_BLOCK_ROWS, rows)
        n_blocks = pl.cdiv(rows, block_rows)
        limit = min(budget, max(32 << 20, 16 * block_rows * LANE * 4))
        out2d = pl.pallas_call(
            _clamp_scale_kernel,
            out_shape=jax.ShapeDtypeStruct((rows, LANE), orig_dtype),
            grid=(n_blocks,),
            in_specs=[pl.BlockSpec(memory_space=pltpu.MemorySpace.SMEM),
                      pl.BlockSpec((block_rows, LANE), lambda i: (i, 0))],
            out_specs=pl.BlockSpec((block_rows, LANE), lambda i: (i, 0)),
            compiler_params=pltpu.CompilerParams(
                dimension_semantics=("parallel",),
                vmem_limit_bytes=limit),
        )(bounds, x2d)

    out = out2d.reshape(-1)
    if out.shape[0] != n:
        out = out[:n]
    return out.reshape(orig_shape)


if __name__ == "__main__":
    def reference(x, quantile):
        data = x.reshape(-1).astype(jnp.float32)
        lo = jnp.quantile(data, 0.5 - quantile / 2.0)
        hi = jnp.quantile(data, 0.5 + quantile / 2.0)
        sc = jnp.maximum(jnp.abs(lo), jnp.abs(hi))
        return (jnp.clip(x.astype(jnp.float32), lo, hi) / sc).astype(x.dtype)

    # PyTorch conv-style NCHW activation: batch=2, channels=4, spatial=16x16.
    x = jax.random.normal(jax.random.PRNGKey(0), (2, 4, 16, 16), jnp.float32) * 3.0 + 0.5
    # Ragged tensor (numel=105) exercising the in-kernel flat-index masking.
    x_ragged = jax.random.normal(jax.random.PRNGKey(1), (3, 5, 7), jnp.float32) * 2.0 - 1.0

    checks = [
        (x,        1.0, False),   # single-pass VMEM-resident path
        (x_ragged, 1.0, False),   # single-pass with masked tail
        (x,        1.0, True),    # streaming partial-reduce + scale path
        (x_ragged, 1.0, True),    # streaming path with masking
        (x,        0.5, False),   # quantile < 1: jnp.quantile bounds + clamp/scale
    ]
    for inp, q, force in checks:
        out = jax.block_until_ready(raw_scale(inp, quantile=q, _force_streaming=force))
        ref = reference(inp, q)
        assert out.shape == inp.shape and out.dtype == inp.dtype
        assert jnp.max(jnp.abs(out - ref)) < 1e-5, (q, force)

    print("KERNEL_OK")
</pallas_src>

<mosaic_0001>
module attributes {stable_mosaic.version = 11 : i64} {
  func.func @_single_pass_kernel(%arg0: memref<16x128xf32, #tpu.memory_space<vmem>>, %arg1: memref<16x128xf32, #tpu.memory_space<vmem>>) attributes {dimension_semantics = [], scalar_prefetch = 0 : i64, scratch_operands = 0 : i64, tpu.core_type = #tpu.core_type<tc>} {
    %c0 = arith.constant 0 : index
    %c0_0 = arith.constant 0 : index
    %0 = vector.load %arg0[%c0, %c0_0] : memref<16x128xf32, #tpu.memory_space<vmem>>, vector<16x128xf32>
    %1 = vector.shape_cast %0 : vector<16x128xf32> to vector<1x16x128xf32>
    %cst = arith.constant dense<0x7F800000> : vector<1xf32>
    %2 = vector.multi_reduction <minimumf>, %1, %cst [1, 2] : vector<1x16x128xf32> to vector<1xf32>
    %3 = vector.shape_cast %2 : vector<1xf32> to vector<1x1x1xf32>
    %4 = vector.extract %3[0, 0, 0] : f32 from vector<1x1x1xf32>
    %5 = vector.shape_cast %0 : vector<16x128xf32> to vector<1x16x128xf32>
    %cst_1 = arith.constant dense<0xFF800000> : vector<1xf32>
    %6 = vector.multi_reduction <maximumf>, %5, %cst_1 [1, 2] : vector<1x16x128xf32> to vector<1xf32>
    %7 = vector.shape_cast %6 : vector<1xf32> to vector<1x1x1xf32>
    %8 = vector.extract %7[0, 0, 0] : f32 from vector<1x1x1xf32>
    %9 = math.absf %4 : f32
    %10 = math.absf %8 : f32
    %11 = arith.maximumf %9, %10 : f32
    %cst_2 = arith.constant 1.000000e+00 : f32
    %12 = arith.divf %cst_2, %11 : f32
    %13 = vector.broadcast %12 : f32 to vector<16x128xf32>
    %14 = arith.mulf %0, %13 : vector<16x128xf32>
    %c0_3 = arith.constant 0 : index
    %c0_4 = arith.constant 0 : index
    %15 = vector.load %arg1[%c0_3, %c0_4] : memref<16x128xf32, #tpu.memory_space<vmem>>, vector<16x128xf32>
    tpu.vector_store %arg1[%c0_3, %c0_4], %14 {strides = array<i32>} : memref<16x128xf32, #tpu.memory_space<vmem>>, vector<16x128xf32>,
    return
  }
}

</mosaic_0001>

<llo_original>
// kernel: tpu_custom_call.1
$region0: #{tpu_custom_call.1}
  #allocation0 [shape = 'u32[]', space=smem, size = 0x4, offset = 0x4, fixed_abs, tag = 'smem constant byte address 0x4 - core index']
  #allocation1 [shape = 'u32[144,128]{1,0:T(1,128)}', space=vmem, size = 0x12000, scoped, tag = 'internal scratch']
  %s0 = inlined_call_operand.hbm [shape: f32[16,128], index: 0, kind: input, shape index: {}]
  %s1 = inlined_call_operand.hbm [shape: f32[16,128], index: 1, kind: output, shape index: {}]
  %s2 = sld [smem:[#allocation0]]
  $region18: #{tpu_custom_call.1} parent=0
    _
  %s4 = ssub.s32 1, %s2
  %s5 = scalar_select 0, %s4, %s2
  $region1: #{tpu_custom_call.1} parent=0
    #allocation2 [shape = 'u8[8192]{0}', space=vmem, size = 0x2000, scoped, tag = 'input window, operand 0, single buffered']
    #allocation3 [shape = 's32[1]{0}', space=sflag, size = 0x4, scoped, tag = 'scoped memory for tpu_custom_call.1']
    #allocation4 [shape = 's32[1]{0}', space=sflag, size = 0x4, scoped, tag = 'scoped memory for tpu_custom_call.1']
    #allocation5 [shape = 'u8[8192]{0}', space=vmem, size = 0x2000, scoped, tag = 'output window, operand 0, single buffered']
    %6 = vsyncpa [#allocation3], 0
    %7 = vsyncpa [#allocation4], 0
    // Predicated region
    $region2: #{tpu_custom_call.1} parent=1 // pred_check
      _
    $region3: #{tpu_custom_call.1} parent=1 // pred_check_branch
      %9 = sbr.rel (0) target = $region5
    $region4: #{tpu_custom_call.1} parent=1 // pred_region
      %s11 = ssub.s32 256, 256
      %12 = vsyncadd [#allocation3], %s11
      %s13 = sshll.u32 [#allocation2], 4
      %s14 = int_to_ptr.vmem [resolvable:$true] %s13
      %19 = dma.hbm_to_vmem [thread:$0]  %s0, 256, %s14, [#allocation3], 128, 128, 8
    $region5: #{tpu_custom_call.1} parent=1 // pred_fallthru
      _
    // Predicated region
    $region6: #{tpu_custom_call.1} parent=1 // pred_check
      _
    $region7: #{tpu_custom_call.1} parent=1 // pred_check_branch
      %21 = sbr.rel (0) target = $region9
    $region8: #{tpu_custom_call.1} parent=1 // pred_region
      %22 = dma.done [#allocation3], 256
    $region9: #{tpu_custom_call.1} parent=1 // pred_fallthru
      _
    %v23 = vld [vmem:[#allocation2] sm:$0xff]
    %v24 = vld [vmem:[#allocation2 + $0x8] sm:$0xff]
    %v25 = vmin.f32 %v23, %v24
    %26 = vmin.xlane.f32.xlu0 %v25
    %v27 = vpop.xlane.xlu0 %26
    %v28 = vrot.slane %v27, 4
    %v29 = vmin.f32 %v27, %v28
    %v30 = vrot.slane %v29, 2
    %v31 = vmin.f32 %v29, %v30
    %v32 = vrot.slane %v31, 1
    %v33 = vmin.f32 %v31, %v32
    %s34 = vtos %v33
    %v35 = vmax.f32 %v23, %v24
    %36 = vmax.xlane.f32.xlu0 %v35
    %v37 = vpop.xlane.xlu0 %36
    %v38 = vrot.slane %v37, 4
    %v39 = vmax.f32 %v37, %v38
    %v40 = vrot.slane %v39, 2
    %v41 = vmax.f32 %v39, %v40
    %v42 = vrot.slane %v41, 1
    %v43 = vmax.f32 %v41, %v42
    %s44 = vtos %v43
    %s45 = sand.u32 2147483647, %s34
    %s46 = sand.u32 2147483647, %s44
    %s47 = smax.f32 %s45, %s46
    %v48 = vstv %s47
    %v49 = vrcp.pop %v48
    %s50 = vtos %v49
    %v51 = vstv %s50
    %v52 = vmul.f32 %v23, %v51
    %v53 = vmul.f32 %v24, %v51
    %54 = vst [vmem:[#allocation5] sm:$0xff] %v52
    %55 = vst [vmem:[#allocation5 + $0x8] sm:$0xff] %v53
    // Predicated region
    $region10: #{tpu_custom_call.1} parent=1 // pred_check
      _
    $region11: #{tpu_custom_call.1} parent=1 // pred_check_branch
      %57 = sbr.rel (0) target = $region13
    $region12: #{tpu_custom_call.1} parent=1 // pred_region
      %s59 = ssub.s32 256, 256
      %60 = vsyncadd [#allocation4], %s59
      %s61 = sshll.u32 [#allocation5], 4
      %s62 = int_to_ptr.vmem [resolvable:$true] %s61
      %67 = dma.vmem_to_hbm [thread:$0]  %s62, 256, %s1, [#allocation4], 128, 128, 8
    $region13: #{tpu_custom_call.1} parent=1 // pred_fallthru
      _
    // Predicated region
    $region14: #{tpu_custom_call.1} parent=1 // pred_check
      _
    $region15: #{tpu_custom_call.1} parent=1 // pred_check_branch
      %69 = sbr.rel (0) target = $region17
    $region16: #{tpu_custom_call.1} parent=1 // pred_region
      %70 = dma.done [#allocation4], 256
    $region17: #{tpu_custom_call.1} parent=1 // pred_fallthru
      _
    %71 = vsyncpa [#allocation3], 1
    %72 = vsyncpa [#allocation4], 1

</llo_original>
